<compile_context>
chip_gen: v6e
topology: v6e:2x2x1
jax: 0.10.0
libtpu: 0.0.40
codegen_flags: <defaults>
</compile_context>

<pallas_src>
import jax
import jax.numpy as jnp
from jax.experimental import pallas as pl
from jax.experimental.pallas import tpu as pltpu

LAYER_SIZES = [200, 128, 64, 32, 16, 1]


def _round_up(x, m):
    return (x + m - 1) // m * m


def _mlp_kernel(x_ref,
                w1_ref, b1_ref,
                w2_ref, b2_ref,
                w3_ref, b3_ref,
                w4_ref, b4_ref,
                w5_ref, b5_ref,
                o_ref):
    """Fused 5x (Linear + Sigmoid) on one batch tile (affine-folded weights).

    x_ref:  (TB, 200) float32 (cast to bf16 in-kernel)
    wK_ref: (in, out) compute dtype (w5 stored as a (1, 16) row)
    bK_ref: (1, out)  compute dtype for hidden layers, float32 for the last
    o_ref:  (TB, 1)   float32
    """
    compute_dtype = w1_ref.dtype

    def layer(h, w_ref, b_ref):
        # MXU matmul with f32 accumulation; bias-add + tanh in the (bf16)
        # activation dtype so the next MXU pass gets bf16 directly.
        z = jnp.dot(h, w_ref[...], preferred_element_type=jnp.float32)
        za = z.astype(b_ref.dtype) + b_ref[...]     # (1, out) broadcasts
        return jnp.tanh(za)                         # EUP; stays in b_ref.dtype

    h = x_ref[...].astype(compute_dtype)            # in-kernel f32 -> bf16 cast
    h = layer(h, w1_ref, b1_ref)
    h = layer(h, w2_ref, b2_ref)
    h = layer(h, w3_ref, b3_ref)
    h = layer(h, w4_ref, b4_ref)

    # Last layer (16 -> 1): VPU multiply + lane reduce in f32; the single
    # remaining 0.5*t + 0.5 turns the folded tanh back into a sigmoid.
    hf = h.astype(jnp.float32)
    w5 = w5_ref[...].astype(jnp.float32)             # (1, 16) row
    z5 = jnp.sum(hf * w5, axis=-1, keepdims=True) + b5_ref[...]
    o_ref[...] = (0.5 * jnp.tanh(z5) + 0.5).astype(o_ref.dtype)


def init_params(key, dtype=jnp.float32):
    """Deterministic params. Shapes mirror nn.Linear, stored as (in, out)."""
    params = []
    for fan_in, fan_out in zip(LAYER_SIZES[:-1], LAYER_SIZES[1:]):
        kw, kb, key = jax.random.split(key, 3)
        bound = 1.0 / jnp.sqrt(jnp.float32(fan_in))   # PyTorch default bound
        w = jax.random.uniform(kw, (fan_in, fan_out), dtype, -bound, bound)
        b = jax.random.uniform(kb, (1, fan_out), dtype, -bound, bound)
        params.append((w, b))
    return params


def fold_params(params):
    """Fold sigmoid(z)=0.5*tanh(0.5*z)+0.5 affine terms into (W, b), in f32."""
    folded = []
    for li, (w, b) in enumerate(params):
        w32 = w.astype(jnp.float32)
        b32 = b.reshape(1, -1).astype(jnp.float32)
        if li == 0:
            wf = 0.5 * w32
            bf = 0.5 * b32
        else:
            wf = 0.25 * w32
            bf = 0.5 * b32 + 0.25 * jnp.sum(w32, axis=0, keepdims=True)
        folded.append((wf, bf))
    return folded


def _choose_tile(batch, max_block_rows):
    """Batch tile rows: multiple of 16, >=2 tiles for larger batches (v7x)."""
    rb = _round_up(batch, 16)
    tb = min(max_block_rows, rb)
    if tb > 256:
        # Guarantee at least two grid steps so dimension_semantics="parallel"
        # gives v7x's second TensorCore real work; keep tiles multiple of 128.
        tb = min(tb, _round_up((rb + 1) // 2, 128))
    return tb


def binary_nn_forward(x, params, *, compute_dtype=jnp.bfloat16,
                      max_block_rows=4096):
    """x: (B, 200) float32 -> (B, 1) float32."""
    B, F = x.shape
    assert F == LAYER_SIZES[0]

    tb = _choose_tile(B, max_block_rows)
    padded_b = _round_up(B, tb)
    num_tiles = padded_b // tb

    # Keep x in f32; only pad (no wrapper-side dtype cast -> no extra HBM pass).
    x_in = x
    if padded_b != B:
        x_in = jnp.pad(x, ((0, padded_b - B), (0, 0)))

    # Pack folded operands: weights/biases in compute dtype (last layer's
    # weight as a (1,16) row for the VPU reduce, its bias in f32).
    folded = fold_params(params)
    n_layers = len(folded)
    flat = []
    wb_specs = []
    for li, (w, b) in enumerate(folded):
        if li == n_layers - 1:
            w_arr = w.reshape(1, -1).astype(compute_dtype)
            b_arr = b.astype(jnp.float32)
        else:
            w_arr = w.astype(compute_dtype)
            b_arr = b.astype(compute_dtype)
        flat.extend([w_arr, b_arr])
        # Constant index_map -> weights/biases stay VMEM-resident across steps.
        wb_specs.append(pl.BlockSpec(w_arr.shape, lambda i: (0, 0)))
        wb_specs.append(pl.BlockSpec(b_arr.shape, lambda i: (0, 0)))

    in_specs = [pl.BlockSpec((tb, F), lambda i: (i, 0))] + wb_specs
    out_spec = pl.BlockSpec((tb, LAYER_SIZES[-1]), lambda i: (i, 0))
    out_shape = jax.ShapeDtypeStruct((padded_b, LAYER_SIZES[-1]), jnp.float32)

    out = pl.pallas_call(
        _mlp_kernel,
        out_shape=out_shape,
        grid=(num_tiles,),
        in_specs=in_specs,
        out_specs=out_spec,
        compiler_params=pltpu.CompilerParams(
            dimension_semantics=("parallel",),    # batch sharded on v7x 2 TCs
            vmem_limit_bytes=32 << 20),
    )(x_in, *flat)

    return out[:B]


def _reference_matched(x, params, compute_dtype=jnp.bfloat16):
    """Pure-JAX reference applying exactly the kernel's casting/math."""
    folded = fold_params(params)
    n = len(folded)
    h = x.astype(compute_dtype)
    for li, (w, b) in enumerate(folded):
        if li < n - 1:
            z = jnp.dot(h, w.astype(compute_dtype),
                        preferred_element_type=jnp.float32)
            za = z.astype(compute_dtype) + b.astype(compute_dtype)
            h = jnp.tanh(za)
        else:
            wf = w.reshape(1, -1).astype(compute_dtype).astype(jnp.float32)
            z = (jnp.sum(h.astype(jnp.float32) * wf, axis=-1, keepdims=True)
                 + b.astype(jnp.float32))
            h = 0.5 * jnp.tanh(z) + 0.5
    return h


def _reference_f32(x, params):
    """Full-f32 reference matching the original PyTorch module semantics."""
    h = x.astype(jnp.float32)
    for w, b in params:
        h = jax.nn.sigmoid(h @ w.astype(jnp.float32)
                           + b.reshape(1, -1).astype(jnp.float32))
    return h


if __name__ == "__main__":
    key = jax.random.PRNGKey(0)
    kx, kx2, kx3, kp = jax.random.split(key, 4)
    params = init_params(kp)

    # Test 1: small single-tile batch.
    B = 8
    x = jax.random.normal(kx, (B, LAYER_SIZES[0]), dtype=jnp.float32)
    out = jax.block_until_ready(binary_nn_forward(x, params))
    ref = _reference_matched(x, params)
    ref32 = _reference_f32(x, params)
    assert out.shape == (B, 1)
    assert jnp.allclose(out, ref, atol=1e-2), (
        f"mismatch vs matched ref: max abs err {jnp.max(jnp.abs(out - ref))}")
    assert jnp.allclose(out, ref32, atol=3e-2), (
        f"mismatch vs f32 ref: max abs err {jnp.max(jnp.abs(out - ref32))}")

    # Test 2: multi-step batch tiling + padding path
    # (B=50 with 16-row tiles -> 4 grid steps, 14 padded rows discarded).
    B2 = 50
    x2 = jax.random.normal(kx2, (B2, LAYER_SIZES[0]), dtype=jnp.float32)
    out2 = jax.block_until_ready(
        binary_nn_forward(x2, params, max_block_rows=16))
    ref2 = _reference_matched(x2, params)
    assert out2.shape == (B2, 1)
    assert jnp.allclose(out2, ref2, atol=1e-2), (
        f"tiled mismatch: max abs err {jnp.max(jnp.abs(out2 - ref2))}")

    # Test 3: larger batch exercising the >=2-tile split (v7x megacore path).
    B3 = 600
    x3 = jax.random.normal(kx3, (B3, LAYER_SIZES[0]), dtype=jnp.float32)
    out3 = jax.block_until_ready(binary_nn_forward(x3, params))
    ref3 = _reference_matched(x3, params)
    assert out3.shape == (B3, 1)
    assert jnp.allclose(out3, ref3, atol=1e-2), (
        f"split mismatch: max abs err {jnp.max(jnp.abs(out3 - ref3))}")

    print("KERNEL_OK")
</pallas_src>

<mosaic_0001>
module attributes {stable_mosaic.version = 11 : i64} {
  func.func @_mlp_kernel(%arg0: i32, %arg1: memref<16x200xf32, #tpu.memory_space<vmem>>, %arg2: memref<200x128xbf16, #tpu.memory_space<vmem>>, %arg3: memref<1x128xbf16, #tpu.memory_space<vmem>>, %arg4: memref<128x64xbf16, #tpu.memory_space<vmem>>, %arg5: memref<1x64xbf16, #tpu.memory_space<vmem>>, %arg6: memref<64x32xbf16, #tpu.memory_space<vmem>>, %arg7: memref<1x32xbf16, #tpu.memory_space<vmem>>, %arg8: memref<32x16xbf16, #tpu.memory_space<vmem>>, %arg9: memref<1x16xbf16, #tpu.memory_space<vmem>>, %arg10: memref<1x16xbf16, #tpu.memory_space<vmem>>, %arg11: memref<1x1xf32, #tpu.memory_space<vmem>>, %arg12: memref<16x1xf32, #tpu.memory_space<vmem>>) attributes {dimension_semantics = [#tpu.dimension_semantics<parallel>], iteration_bounds = array<i64: 1>, scalar_prefetch = 0 : i64, scratch_operands = 0 : i64, tpu.core_type = #tpu.core_type<tc>, window_params = [{transform_indices = @transform_0, window_bounds = array<i64: 16, 200>}, {pipeline_mode = #tpu.pipeline_mode<synchronous>, transform_indices = @transform_1, window_bounds = array<i64: 200, 128>}, {pipeline_mode = #tpu.pipeline_mode<synchronous>, transform_indices = @transform_2, window_bounds = array<i64: 1, 128>}, {pipeline_mode = #tpu.pipeline_mode<synchronous>, transform_indices = @transform_3, window_bounds = array<i64: 128, 64>}, {pipeline_mode = #tpu.pipeline_mode<synchronous>, transform_indices = @transform_4, window_bounds = array<i64: 1, 64>}, {pipeline_mode = #tpu.pipeline_mode<synchronous>, transform_indices = @transform_5, window_bounds = array<i64: 64, 32>}, {pipeline_mode = #tpu.pipeline_mode<synchronous>, transform_indices = @transform_6, window_bounds = array<i64: 1, 32>}, {pipeline_mode = #tpu.pipeline_mode<synchronous>, transform_indices = @transform_7, window_bounds = array<i64: 32, 16>}, {pipeline_mode = #tpu.pipeline_mode<synchronous>, transform_indices = @transform_8, window_bounds = array<i64: 1, 16>}, {pipeline_mode = #tpu.pipeline_mode<synchronous>, transform_indices = @transform_9, window_bounds = array<i64: 1, 16>}, {pipeline_mode = #tpu.pipeline_mode<synchronous>, transform_indices = @transform_10, window_bounds = array<i64: 1, 1>}, {transform_indices = @transform_11, window_bounds = array<i64: 16, 1>}]} {
    %c0 = arith.constant 0 : index
    %c0_0 = arith.constant 0 : index
    %0 = vector.load %arg1[%c0, %c0_0] : memref<16x200xf32, #tpu.memory_space<vmem>>, vector<16x200xf32>
    %1 = arith.truncf %0 : vector<16x200xf32> to vector<16x200xbf16>
    %c0_1 = arith.constant 0 : index
    %c0_2 = arith.constant 0 : index
    %2 = vector.load %arg2[%c0_1, %c0_2] : memref<200x128xbf16, #tpu.memory_space<vmem>>, vector<200x128xbf16>
    %cst = arith.constant dense<0.000000e+00> : vector<16x128xf32>
    %3 = tpu.matmul %1, %2, %cst {dimension_numbers = #tpu.dot_dimension_numbers<[1], [0], [0], [1], [0, 0, 1, 1], [], []>} : vector<16x200xbf16>, vector<200x128xbf16>, vector<16x128xf32> -> vector<16x128xf32>
    %4 = arith.truncf %3 : vector<16x128xf32> to vector<16x128xbf16>
    %c0_3 = arith.constant 0 : index
    %c0_4 = arith.constant 0 : index
    %5 = vector.load %arg3[%c0_3, %c0_4] : memref<1x128xbf16, #tpu.memory_space<vmem>>, vector<1x128xbf16>
    %6 = vector.broadcast %5 : vector<1x128xbf16> to vector<16x128xbf16>
    %7 = arith.addf %4, %6 : vector<16x128xbf16>
    %8 = math.tanh %7 : vector<16x128xbf16>
    %c0_5 = arith.constant 0 : index
    %c0_6 = arith.constant 0 : index
    %9 = vector.load %arg4[%c0_5, %c0_6] : memref<128x64xbf16, #tpu.memory_space<vmem>>, vector<128x64xbf16>
    %cst_7 = arith.constant dense<0.000000e+00> : vector<16x64xf32>
    %10 = tpu.matmul %8, %9, %cst_7 {dimension_numbers = #tpu.dot_dimension_numbers<[1], [0], [0], [1], [0, 0, 1, 1], [], []>} : vector<16x128xbf16>, vector<128x64xbf16>, vector<16x64xf32> -> vector<16x64xf32>
    %11 = arith.truncf %10 : vector<16x64xf32> to vector<16x64xbf16>
    %c0_8 = arith.constant 0 : index
    %c0_9 = arith.constant 0 : index
    %12 = vector.load %arg5[%c0_8, %c0_9] : memref<1x64xbf16, #tpu.memory_space<vmem>>, vector<1x64xbf16>
    %13 = vector.broadcast %12 : vector<1x64xbf16> to vector<16x64xbf16>
    %14 = arith.addf %11, %13 : vector<16x64xbf16>
    %15 = math.tanh %14 : vector<16x64xbf16>
    %c0_10 = arith.constant 0 : index
    %c0_11 = arith.constant 0 : index
    %16 = vector.load %arg6[%c0_10, %c0_11] : memref<64x32xbf16, #tpu.memory_space<vmem>>, vector<64x32xbf16>
    %cst_12 = arith.constant dense<0.000000e+00> : vector<16x32xf32>
    %17 = tpu.matmul %15, %16, %cst_12 {dimension_numbers = #tpu.dot_dimension_numbers<[1], [0], [0], [1], [0, 0, 1, 1], [], []>} : vector<16x64xbf16>, vector<64x32xbf16>, vector<16x32xf32> -> vector<16x32xf32>
    %18 = arith.truncf %17 : vector<16x32xf32> to vector<16x32xbf16>
    %c0_13 = arith.constant 0 : index
    %c0_14 = arith.constant 0 : index
    %19 = vector.load %arg7[%c0_13, %c0_14] : memref<1x32xbf16, #tpu.memory_space<vmem>>, vector<1x32xbf16>
    %20 = vector.broadcast %19 : vector<1x32xbf16> to vector<16x32xbf16>
    %21 = arith.addf %18, %20 : vector<16x32xbf16>
    %22 = math.tanh %21 : vector<16x32xbf16>
    %c0_15 = arith.constant 0 : index
    %c0_16 = arith.constant 0 : index
    %23 = vector.load %arg8[%c0_15, %c0_16] : memref<32x16xbf16, #tpu.memory_space<vmem>>, vector<32x16xbf16>
    %cst_17 = arith.constant dense<0.000000e+00> : vector<16x16xf32>
    %24 = tpu.matmul %22, %23, %cst_17 {dimension_numbers = #tpu.dot_dimension_numbers<[1], [0], [0], [1], [0, 0, 1, 1], [], []>} : vector<16x32xbf16>, vector<32x16xbf16>, vector<16x16xf32> -> vector<16x16xf32>
    %25 = arith.truncf %24 : vector<16x16xf32> to vector<16x16xbf16>
    %c0_18 = arith.constant 0 : index
    %c0_19 = arith.constant 0 : index
    %26 = vector.load %arg9[%c0_18, %c0_19] : memref<1x16xbf16, #tpu.memory_space<vmem>>, vector<1x16xbf16>
    %27 = vector.broadcast %26 : vector<1x16xbf16> to vector<16x16xbf16>
    %28 = arith.addf %25, %27 : vector<16x16xbf16>
    %29 = math.tanh %28 : vector<16x16xbf16>
    %30 = arith.extf %29 : vector<16x16xbf16> to vector<16x16xf32>
    %c0_20 = arith.constant 0 : index
    %c0_21 = arith.constant 0 : index
    %31 = vector.load %arg10[%c0_20, %c0_21] : memref<1x16xbf16, #tpu.memory_space<vmem>>, vector<1x16xbf16>
    %32 = arith.extf %31 : vector<1x16xbf16> to vector<1x16xf32>
    %33 = vector.broadcast %32 : vector<1x16xf32> to vector<16x16xf32>
    %34 = arith.mulf %30, %33 : vector<16x16xf32>
    %cst_22 = arith.constant dense<0.000000e+00> : vector<16xf32>
    %35 = vector.multi_reduction <add>, %34, %cst_22 [1] : vector<16x16xf32> to vector<16xf32>
    %36 = vector.shape_cast %35 : vector<16xf32> to vector<16x1xf32>
    %c0_23 = arith.constant 0 : index
    %c0_24 = arith.constant 0 : index
    %37 = vector.load %arg11[%c0_23, %c0_24] : memref<1x1xf32, #tpu.memory_space<vmem>>, vector<1x1xf32>
    %38 = vector.broadcast %37 : vector<1x1xf32> to vector<16x1xf32>
    %39 = arith.addf %36, %38 : vector<16x1xf32>
    %40 = math.tanh %39 : vector<16x1xf32>
    %cst_25 = arith.constant 5.000000e-01 : f32
    %41 = vector.broadcast %cst_25 : f32 to vector<16x1xf32>
    %42 = arith.mulf %41, %40 : vector<16x1xf32>
    %cst_26 = arith.constant 5.000000e-01 : f32
    %43 = vector.broadcast %cst_26 : f32 to vector<16x1xf32>
    %44 = arith.addf %42, %43 : vector<16x1xf32>
    %c0_27 = arith.constant 0 : index
    %c0_28 = arith.constant 0 : index
    %45 = vector.load %arg12[%c0_27, %c0_28] : memref<16x1xf32, #tpu.memory_space<vmem>>, vector<16x1xf32>
    tpu.vector_store %arg12[%c0_27, %c0_28], %44 {strides = array<i32>} : memref<16x1xf32, #tpu.memory_space<vmem>>, vector<16x1xf32>,
    return
  }
  func.func @transform_0(%arg0: i32) -> (i32, i32) {
    %c0_i32 = arith.constant 0 : i32
    %c0_i32_0 = arith.constant 0 : i32
    return %arg0, %c0_i32 : i32, i32
  }
  func.func @transform_1(%arg0: i32) -> (i32, i32) {
    %c0_i32 = arith.constant 0 : i32
    %c0_i32_0 = arith.constant 0 : i32
    %c0_i32_1 = arith.constant 0 : i32
    return %c0_i32, %c0_i32_0 : i32, i32
  }
  func.func @transform_2(%arg0: i32) -> (i32, i32) {
    %c0_i32 = arith.constant 0 : i32
    %c0_i32_0 = arith.constant 0 : i32
    %c0_i32_1 = arith.constant 0 : i32
    return %c0_i32, %c0_i32_0 : i32, i32
  }
  func.func @transform_3(%arg0: i32) -> (i32, i32) {
    %c0_i32 = arith.constant 0 : i32
    %c0_i32_0 = arith.constant 0 : i32
    %c0_i32_1 = arith.constant 0 : i32
    return %c0_i32, %c0_i32_0 : i32, i32
  }
  func.func @transform_4(%arg0: i32) -> (i32, i32) {
    %c0_i32 = arith.constant 0 : i32
    %c0_i32_0 = arith.constant 0 : i32
    %c0_i32_1 = arith.constant 0 : i32
    return %c0_i32, %c0_i32_0 : i32, i32
  }
  func.func @transform_5(%arg0: i32) -> (i32, i32) {
    %c0_i32 = arith.constant 0 : i32
    %c0_i32_0 = arith.constant 0 : i32
    %c0_i32_1 = arith.constant 0 : i32
    return %c0_i32, %c0_i32_0 : i32, i32
  }
  func.func @transform_6(%arg0: i32) -> (i32, i32) {
    %c0_i32 = arith.constant 0 : i32
    %c0_i32_0 = arith.constant 0 : i32
    %c0_i32_1 = arith.constant 0 : i32
    return %c0_i32, %c0_i32_0 : i32, i32
  }
  func.func @transform_7(%arg0: i32) -> (i32, i32) {
    %c0_i32 = arith.constant 0 : i32
    %c0_i32_0 = arith.constant 0 : i32
    %c0_i32_1 = arith.constant 0 : i32
    return %c0_i32, %c0_i32_0 : i32, i32
  }
  func.func @transform_8(%arg0: i32) -> (i32, i32) {
    %c0_i32 = arith.constant 0 : i32
    %c0_i32_0 = arith.constant 0 : i32
    %c0_i32_1 = arith.constant 0 : i32
    return %c0_i32, %c0_i32_0 : i32, i32
  }
  func.func @transform_9(%arg0: i32) -> (i32, i32) {
    %c0_i32 = arith.constant 0 : i32
    %c0_i32_0 = arith.constant 0 : i32
    %c0_i32_1 = arith.constant 0 : i32
    return %c0_i32, %c0_i32_0 : i32, i32
  }
  func.func @transform_10(%arg0: i32) -> (i32, i32) {
    %c0_i32 = arith.constant 0 : i32
    %c0_i32_0 = arith.constant 0 : i32
    %c0_i32_1 = arith.constant 0 : i32
    return %c0_i32, %c0_i32_0 : i32, i32
  }
  func.func @transform_11(%arg0: i32) -> (i32, i32) {
    %c0_i32 = arith.constant 0 : i32
    %c0_i32_0 = arith.constant 0 : i32
    return %arg0, %c0_i32 : i32, i32
  }
}

</mosaic_0001>

<llo_original>
// kernel: tpu_custom_call.1
$region0: #{tpu_custom_call.1}
  #allocation0 [shape = 'u32[]', space=smem, size = 0x4, offset = 0x4, fixed_abs, tag = 'smem constant byte address 0x4 - core index']
  #allocation1 [shape = 'u32[144,128]{1,0:T(1,128)}', space=vmem, size = 0x12000, scoped, tag = 'internal scratch']
  #allocation2 [shape = 'f32[1,1]{1,0:T(1,128)S(1)}', space=vmem, size = 0x200, scoped, tag = 'scoped memory for tpu_custom_call.1']
  %s0 = inlined_call_operand.vmem [shape: f32[16,200], index: 0, kind: input, shape index: {}]
  %s1 = inlined_call_operand.vmem [shape: bf16[200,128], index: 1, kind: input, shape index: {}]
  %s2 = inlined_call_operand.vmem [shape: bf16[1,128], index: 2, kind: input, shape index: {}]
  %s3 = inlined_call_operand.vmem [shape: bf16[128,64], index: 3, kind: input, shape index: {}]
  %s4 = inlined_call_operand.vmem [shape: bf16[1,64], index: 4, kind: input, shape index: {}]
  %s5 = inlined_call_operand.vmem [shape: bf16[64,32], index: 5, kind: input, shape index: {}]
  %s6 = inlined_call_operand.vmem [shape: bf16[1,32], index: 6, kind: input, shape index: {}]
  %s7 = inlined_call_operand.vmem [shape: bf16[32,16], index: 7, kind: input, shape index: {}]
  %s8 = inlined_call_operand.vmem [shape: bf16[1,16], index: 8, kind: input, shape index: {}]
  %s9 = inlined_call_operand.vmem [shape: bf16[1,16], index: 9, kind: input, shape index: {}]
  %s10 = inlined_call_operand.<no memory space> [shape: f32[1,1], index: 10, kind: input, shape index: {}]
  %s11 = inlined_call_operand.vmem [shape: f32[16,1], index: 11, kind: output, shape index: {}]
  %s12 = sld [smem:[#allocation0]]
  $region54: #{tpu_custom_call.1} parent=0
    _
  %s14 = ssub.s32 1, %s12
  %s15 = scalar_select 0, %s14, %s12
  %v16 = vstv %s10
  %17 = vst [vmem:[#allocation2] sm:$0x1] %v16
  // Predicated region
  $region2: #{tpu_custom_call.1} parent=0 // pred_check
    _
  $region3: #{tpu_custom_call.1} parent=0 // pred_check_branch
    %19 = sbr.rel (0) target = $region5
  $region4: #{tpu_custom_call.1} parent=0 // pred_region
    _
  $region5: #{tpu_custom_call.1} parent=0 // pred_fallthru
    _
  // Predicated region
  $region6: #{tpu_custom_call.1} parent=0 // pred_check
    _
  $region7: #{tpu_custom_call.1} parent=0 // pred_check_branch
    %21 = sbr.rel (0) target = $region9
  $region8: #{tpu_custom_call.1} parent=0 // pred_region
    _
  $region9: #{tpu_custom_call.1} parent=0 // pred_fallthru
    _
  // Predicated region
  $region10: #{tpu_custom_call.1} parent=0 // pred_check
    _
  $region11: #{tpu_custom_call.1} parent=0 // pred_check_branch
    %23 = sbr.rel (0) target = $region13
  $region12: #{tpu_custom_call.1} parent=0 // pred_region
    _
  $region13: #{tpu_custom_call.1} parent=0 // pred_fallthru
    _
  // Predicated region
  $region14: #{tpu_custom_call.1} parent=0 // pred_check
    _
  $region15: #{tpu_custom_call.1} parent=0 // pred_check_branch
    %25 = sbr.rel (0) target = $region17
  $region16: #{tpu_custom_call.1} parent=0 // pred_region
    _
  $region17: #{tpu_custom_call.1} parent=0 // pred_fallthru
    _
  // Predicated region
  $region18: #{tpu_custom_call.1} parent=0 // pred_check
    _
  $region19: #{tpu_custom_call.1} parent=0 // pred_check_branch
    %27 = sbr.rel (0) target = $region21
  $region20: #{tpu_custom_call.1} parent=0 // pred_region
    _
  $region21: #{tpu_custom_call.1} parent=0 // pred_fallthru
    _
  // Predicated region
  $region22: #{tpu_custom_call.1} parent=0 // pred_check
    _
  $region23: #{tpu_custom_call.1} parent=0 // pred_check_branch
    %29 = sbr.rel (0) target = $region25
  $region24: #{tpu_custom_call.1} parent=0 // pred_region
    _
  $region25: #{tpu_custom_call.1} parent=0 // pred_fallthru
    _
  // Predicated region
  $region26: #{tpu_custom_call.1} parent=0 // pred_check
    _
  $region27: #{tpu_custom_call.1} parent=0 // pred_check_branch
    %31 = sbr.rel (0) target = $region29
  $region28: #{tpu_custom_call.1} parent=0 // pred_region
    _
  $region29: #{tpu_custom_call.1} parent=0 // pred_fallthru
    _
  // Predicated region
  $region30: #{tpu_custom_call.1} parent=0 // pred_check
    _
  $region31: #{tpu_custom_call.1} parent=0 // pred_check_branch
    %33 = sbr.rel (0) target = $region33
  $region32: #{tpu_custom_call.1} parent=0 // pred_region
    _
  $region33: #{tpu_custom_call.1} parent=0 // pred_fallthru
    _
  // Predicated region
  $region34: #{tpu_custom_call.1} parent=0 // pred_check
    _
  $region35: #{tpu_custom_call.1} parent=0 // pred_check_branch
    %35 = sbr.rel (0) target = $region37
  $region36: #{tpu_custom_call.1} parent=0 // pred_region
    _
  $region37: #{tpu_custom_call.1} parent=0 // pred_fallthru
    _
  // Predicated region
  $region38: #{tpu_custom_call.1} parent=0 // pred_check
    _
  $region39: #{tpu_custom_call.1} parent=0 // pred_check_branch
    %37 = sbr.rel (0) target = $region41
  $region40: #{tpu_custom_call.1} parent=0 // pred_region
    _
  $region41: #{tpu_custom_call.1} parent=0 // pred_fallthru
    _
  // Predicated region
  $region42: #{tpu_custom_call.1} parent=0 // pred_check
    _
  $region43: #{tpu_custom_call.1} parent=0 // pred_check_branch
    %39 = sbr.rel (0) target = $region45
  $region44: #{tpu_custom_call.1} parent=0 // pred_region
    _
  $region45: #{tpu_custom_call.1} parent=0 // pred_fallthru
    _
  %v41 = vld [vmem:[%s0] sm:$0xff]
  %v42 = vld [vmem:[%s0 + $0x8] sm:$0xff]
  %v43 = vld [vmem:[%s0 + $0x10] sm:$0xff]
  %v44 = vld [vmem:[%s0 + $0x18] sm:$0xff]
  %v45 = vpack.c.bf16 %v43, %v41
  %v46 = vpack.c.bf16 %v44, %v42
  %v47 = vld [vmem:[%s1] sm:$0xf]
  %v48 = vld [vmem:[%s1 + $0x4] sm:$0xf]
  %v49 = vld [vmem:[%s1 + $0x8] sm:$0xf]
  %v50 = vld [vmem:[%s1 + $0xc] sm:$0xf]
  %v51 = vld [vmem:[%s1 + $0x10] sm:$0xf]
  %v52 = vld [vmem:[%s1 + $0x14] sm:$0xf]
  %v53 = vld [vmem:[%s1 + $0x18] sm:$0xf]
  %v54 = vld [vmem:[%s1 + $0x1c] sm:$0xf]
  %v55 = vld [vmem:[%s1 + $0x20] sm:$0xf]
  %v56 = vld [vmem:[%s1 + $0x24] sm:$0xf]
  %v57 = vld [vmem:[%s1 + $0x28] sm:$0xf]
  %v58 = vld [vmem:[%s1 + $0x2c] sm:$0xf]
  %v59 = vld [vmem:[%s1 + $0x30] sm:$0xf]
  %v60 = vld [vmem:[%s1 + $0x34] sm:$0xf]
  %v61 = vld [vmem:[%s1 + $0x38] sm:$0xf]
  %v62 = vld [vmem:[%s1 + $0x3c] sm:$0xf]
  %v63 = vld [vmem:[%s1 + $0x40] sm:$0xf]
  %v64 = vld [vmem:[%s1 + $0x44] sm:$0xf]
  %v65 = vld [vmem:[%s1 + $0x48] sm:$0xf]
  %v66 = vld [vmem:[%s1 + $0x4c] sm:$0xf]
  %v67 = vld [vmem:[%s1 + $0x50] sm:$0xf]
  %v68 = vld [vmem:[%s1 + $0x54] sm:$0xf]
  %v69 = vld [vmem:[%s1 + $0x58] sm:$0xf]
  %v70 = vld [vmem:[%s1 + $0x5c] sm:$0xf]
  %v71 = vld [vmem:[%s1 + $0x60] sm:$0xf]
  %v97 = vunpack.c.l.b16 %v47
  %v98 = vunpack.c.l.b16 %v48
  %v99 = vunpack.c.l.b16 %v49
  %v100 = vunpack.c.l.b16 %v50
  %v101 = vunpack.c.l.b16 %v51
  %v102 = vunpack.c.l.b16 %v52
  %v103 = vunpack.c.l.b16 %v53
  %v104 = vunpack.c.l.b16 %v54
  %v105 = vunpack.c.l.b16 %v55
  %v106 = vunpack.c.l.b16 %v56
  %v107 = vunpack.c.l.b16 %v57
  %v108 = vunpack.c.l.b16 %v58
  %v109 = vunpack.c.l.b16 %v59
  %v110 = vunpack.c.l.b16 %v60
  %v111 = vunpack.c.l.b16 %v61
  %v112 = vunpack.c.l.b16 %v62
  %v113 = vunpack.c.l.b16 %v63
  %v114 = vunpack.c.l.b16 %v64
  %v115 = vunpack.c.l.b16 %v65
  %v116 = vunpack.c.l.b16 %v66
  %v117 = vunpack.c.l.b16 %v67
  %v118 = vunpack.c.l.b16 %v68
  %v119 = vunpack.c.l.b16 %v69
  %v120 = vunpack.c.l.b16 %v70
  %v121 = vunpack.c.l.b16 %v71
  %v122 = vpack.c.b16 %v98, %v97
  %v123 = vpack.c.b16 %v100, %v99
  %v124 = vpack.c.b16 %v102, %v101
  %v125 = vpack.c.b16 %v104, %v103
  %v126 = vpack.c.b16 %v106, %v105
  %v127 = vpack.c.b16 %v108, %v107
  %v128 = vpack.c.b16 %v110, %v109
  %v129 = vpack.c.b16 %v112, %v111
  %v130 = vpack.c.b16 %v114, %v113
  %v131 = vpack.c.b16 %v116, %v115
  %v132 = vpack.c.b16 %v118, %v117
  %v133 = vpack.c.b16 %v120, %v119
  %v134 = vpack.c.b16 %v121, %v121
  %vm147 = vcmask 588800
  %v149 = vsel %vm147, %v46, 0
  %vm151 = vcmask 1043456
  %v153 = vsel %vm151, %v134, 0
  %155 = vmatprep.subr.bf16.mxu0 0
  %156 = vmatpush1.bf16.msra.mxu0 %v129
  %157 = vmatprep.subr.bf16.mxu0 0
  %158 = vmatpush1.bf16.msra.mxu0 %v128
  %159 = vmatprep.subr.bf16.mxu0 0
  %160 = vmatpush1.bf16.msra.mxu0 %v127
  %161 = vmatprep.subr.bf16.mxu0 0
  %162 = vmatpush1.bf16.msra.mxu0 %v126
  %163 = vmatprep.subr.bf16.mxu0 0
  %164 = vmatpush1.bf16.msra.mxu0 %v125
  %165 = vmatprep.subr.bf16.mxu0 0
  %166 = vmatpush1.bf16.msra.mxu0 %v124
  %167 = vmatprep.subr.bf16.mxu0 0
  %168 = vmatpush1.bf16.msra.mxu0 %v123
  %169 = vmatprep.subr.bf16.mxu0 0
  %170 = vmatpush1.bf16.msra.mxu0 %v122
  %171 = vmatprep.subr.bf16.mxu0 0
  %172 = vmatpush2.bf16.msra.mxu0 0
  %173 = vmatprep.subr.bf16.mxu0 0
  %174 = vmatpush2.bf16.msra.mxu0 0
  %175 = vmatprep.subr.bf16.mxu0 0
  %176 = vmatpush2.bf16.msra.mxu0 0
  %177 = vmatprep.subr.bf16.mxu0 0
  %178 = vmatpush2.bf16.msra.mxu0 %v153
  %179 = vmatprep.subr.bf16.mxu0 0
  %180 = vmatpush2.bf16.msra.mxu0 %v133
  %181 = vmatprep.subr.bf16.mxu0 0
  %182 = vmatpush2.bf16.msra.mxu0 %v132
  %183 = vmatprep.subr.bf16.mxu0 0
  %184 = vmatpush2.bf16.msra.mxu0 %v131
  %185 = vmatprep.subr.bf16.mxu0 0
  %186 = vmatpush2.bf16.msra.mxu0 %v130
  %187 = vmatprep.mubr.bf16.mxu0 %v149
  %188 = vmatmul.mubr.bf16.gmra.mxu0 %v45
  %v189 = vpop.f32.mrf.mxu0
  %v190 = vadd.f32 0.0, %v189
  %v191 = vpop.f32.mrf.mxu0
  %v192 = vpop.f32.mrf.mxu0
  %v193 = vadd.f32 0.0, %v192
  %v194 = vpop.f32.mrf.mxu0
  %195 = vdwg.mxu0
  %v196 = vpack.c.bf16 %v193, %v190
  %v197 = vld [vmem:[%s2] sm:$0x1]
  %v199 = vpack.i.b16 %v197, %v197
  %v201 = vlaneseq
  %v202 = vshrl.u32 %v201, 7
  %v203 = vsub.s32 0, %v202
  %v204 = vrot.slane %v199, %v203
  %v205 = vadd.bf16 %v196, %v204
  %v206 = vtanh.bf16.pop %v205
  %v207 = vld [vmem:[%s3] sm:$0xf]
  %v208 = vld [vmem:[%s3 + $0x4] sm:$0xf]
  %v209 = vld [vmem:[%s3 + $0x8] sm:$0xf]
  %v210 = vld [vmem:[%s3 + $0xc] sm:$0xf]
  %v211 = vld [vmem:[%s3 + $0x10] sm:$0xf]
  %v212 = vld [vmem:[%s3 + $0x14] sm:$0xf]
  %v213 = vld [vmem:[%s3 + $0x18] sm:$0xf]
  %v214 = vld [vmem:[%s3 + $0x1c] sm:$0xf]
  %v215 = vld [vmem:[%s3 + $0x20] sm:$0xf]
  %v216 = vld [vmem:[%s3 + $0x24] sm:$0xf]
  %v217 = vld [vmem:[%s3 + $0x28] sm:$0xf]
  %v218 = vld [vmem:[%s3 + $0x2c] sm:$0xf]
  %v219 = vld [vmem:[%s3 + $0x30] sm:$0xf]
  %v220 = vld [vmem:[%s3 + $0x34] sm:$0xf]
  %v221 = vld [vmem:[%s3 + $0x38] sm:$0xf]
  %v222 = vld [vmem:[%s3 + $0x3c] sm:$0xf]
  %v239 = vunpack.c.l.b16 %v207
  %v240 = vunpack.c.l.b16 %v208
  %v241 = vunpack.c.l.b16 %v209
  %v242 = vunpack.c.l.b16 %v210
  %v243 = vunpack.c.l.b16 %v211
  %v244 = vunpack.c.l.b16 %v212
  %v245 = vunpack.c.l.b16 %v213
  %v246 = vunpack.c.l.b16 %v214
  %v247 = vunpack.c.l.b16 %v215
  %v248 = vunpack.c.l.b16 %v216
  %v249 = vunpack.c.l.b16 %v217
  %v250 = vunpack.c.l.b16 %v218
  %v251 = vunpack.c.l.b16 %v219
  %v252 = vunpack.c.l.b16 %v220
  %v253 = vunpack.c.l.b16 %v221
  %v254 = vunpack.c.l.b16 %v222
  %v255 = vpack.c.b16 %v240, %v239
  %v256 = vpack.c.b16 %v242, %v241
  %v257 = vpack.c.b16 %v244, %v243
  %v258 = vpack.c.b16 %v246, %v245
  %v259 = vpack.c.b16 %v248, %v247
  %v260 = vpack.c.b16 %v250, %v249
  %v261 = vpack.c.b16 %v252, %v251
  %v262 = vpack.c.b16 %v254, %v253
  %271 = vmatprep.subr.bf16.mxu0 0
  %272 = vmatpush1.bf16.msra.mxu0 %v262
  %273 = vmatprep.subr.bf16.mxu0 0
  %274 = vmatpush1.bf16.msra.mxu0 %v261
  %275 = vmatprep.subr.bf16.mxu0 0
  %276 = vmatpush1.bf16.msra.mxu0 %v260
  %277 = vmatprep.subr.bf16.mxu0 0
  %278 = vmatpush1.bf16.msra.mxu0 %v259
  %279 = vmatprep.subr.bf16.mxu0 0
  %280 = vmatpush1.bf16.msra.mxu0 %v258
  %281 = vmatprep.subr.bf16.mxu0 0
  %282 = vmatpush1.bf16.msra.mxu0 %v257
  %283 = vmatprep.subr.bf16.mxu0 0
  %284 = vmatpush1.bf16.msra.mxu0 %v256
  %285 = vmatprep.subr.bf16.mxu0 0
  %286 = vmatpush1.bf16.msra.mxu0 %v255
  %287 = vmatprep.subr.bf16.mxu0 0
  %288 = vmatpush2.bf16.msra.mxu0 0
  %289 = vmatprep.subr.bf16.mxu0 0
  %290 = vmatpush2.bf16.msra.mxu0 0
  %291 = vmatprep.subr.bf16.mxu0 0
  %292 = vmatpush2.bf16.msra.mxu0 0
  %293 = vmatprep.subr.bf16.mxu0 0
  %294 = vmatpush2.bf16.msra.mxu0 0
  %295 = vmatprep.subr.bf16.mxu0 0
  %296 = vmatpush2.bf16.msra.mxu0 0
  %297 = vmatprep.subr.bf16.mxu0 0
  %298 = vmatpush2.bf16.msra.mxu0 0
  %299 = vmatprep.subr.bf16.mxu0 0
  %300 = vmatpush2.bf16.msra.mxu0 0
  %301 = vmatprep.subr.bf16.mxu0 0
  %302 = vmatpush2.bf16.msra.mxu0 0
  %303 = vmatprep.mubr.bf16.mxu0 0
  %304 = vmatmul.mubr.bf16.gmra.mxu0 %v206
  %v305 = vpop.f32.mrf.mxu0
  %v306 = vadd.f32 0.0, %v305
  %v307 = vpop.f32.mrf.mxu0
  %v308 = vpop.f32.mrf.mxu0
  %v309 = vadd.f32 0.0, %v308
  %v310 = vpop.f32.mrf.mxu0
  %311 = vdwg.mxu0
  %v312 = vpack.c.bf16 %v309, %v306
  %v313 = vld [vmem:[%s4] sm:$0x1]
  %v315 = vpack.i.b16 %v313, %v313
  %v317 = vlaneseq
  %v318 = vshrl.u32 %v317, 7
  %v319 = vsub.s32 0, %v318
  %v320 = vrot.slane %v315, %v319
  %v321 = vadd.bf16 %v312, %v320
  %v322 = vtanh.bf16.pop %v321
  %v323 = vld [vmem:[%s5] sm:$0xf]
  %v324 = vld [vmem:[%s5 + $0x4] sm:$0xf]
  %v325 = vld [vmem:[%s5 + $0x8] sm:$0xf]
  %v326 = vld [vmem:[%s5 + $0xc] sm:$0xf]
  %v327 = vld [vmem:[%s5 + $0x10] sm:$0xf]
  %v328 = vld [vmem:[%s5 + $0x14] sm:$0xf]
  %v329 = vld [vmem:[%s5 + $0x18] sm:$0xf]
  %v330 = vld [vmem:[%s5 + $0x1c] sm:$0xf]
  %v339 = vunpack.c.l.b16 %v323
  %v340 = vunpack.c.l.b16 %v324
  %v341 = vunpack.c.l.b16 %v325
  %v342 = vunpack.c.l.b16 %v326
  %v343 = vunpack.c.l.b16 %v327
  %v344 = vunpack.c.l.b16 %v328
  %v345 = vunpack.c.l.b16 %v329
  %v346 = vunpack.c.l.b16 %v330
  %v347 = vpack.c.b16 %v340, %v339
  %v348 = vpack.c.b16 %v342, %v341
  %v349 = vpack.c.b16 %v344, %v343
  %v350 = vpack.c.b16 %v346, %v345
  %vm355 = vcmask 523264
  %v357 = vsel %vm355, %v322, 0
  %359 = vmatprep.subr.bf16.mxu0 0
  %360 = vmatpush1.bf16.msra.mxu0 0
  %361 = vmatprep.subr.bf16.mxu0 0
  %362 = vmatpush1.bf16.msra.mxu0 0
  %363 = vmatprep.subr.bf16.mxu0 0
  %364 = vmatpush1.bf16.msra.mxu0 0
  %365 = vmatprep.subr.bf16.mxu0 0
  %366 = vmatpush1.bf16.msra.mxu0 0
  %367 = vmatprep.subr.bf16.mxu0 0
  %368 = vmatpush1.bf16.msra.mxu0 %v350
  %369 = vmatprep.subr.bf16.mxu0 0
  %370 = vmatpush1.bf16.msra.mxu0 %v349
  %371 = vmatprep.subr.bf16.mxu0 0
  %372 = vmatpush1.bf16.msra.mxu0 %v348
  %373 = vmatprep.subr.bf16.mxu0 0
  %374 = vmatpush1.bf16.msra.mxu0 %v347
  %375 = vmatprep.subr.bf16.mxu0 0
  %376 = vmatpush2.bf16.msra.mxu0 0
  %377 = vmatprep.subr.bf16.mxu0 0
  %378 = vmatpush2.bf16.msra.mxu0 0
  %379 = vmatprep.subr.bf16.mxu0 0
  %380 = vmatpush2.bf16.msra.mxu0 0
  %381 = vmatprep.subr.bf16.mxu0 0
  %382 = vmatpush2.bf16.msra.mxu0 0
  %383 = vmatprep.subr.bf16.mxu0 0
  %384 = vmatpush2.bf16.msra.mxu0 0
  %385 = vmatprep.subr.bf16.mxu0 0
  %386 = vmatpush2.bf16.msra.mxu0 0
  %387 = vmatprep.subr.bf16.mxu0 0
  %388 = vmatpush2.bf16.msra.mxu0 0
  %389 = vmatprep.subr.bf16.mxu0 0
  %390 = vmatpush2.bf16.msra.mxu0 0
  %391 = vmatprep.mubr.bf16.mxu0 0
  %392 = vmatmul.mubr.bf16.gmra.mxu0 %v357
  %v393 = vpop.f32.mrf.mxu0
  %v394 = vadd.f32 0.0, %v393
  %v395 = vpop.f32.mrf.mxu0
  %v396 = vpop.f32.mrf.mxu0
  %v397 = vadd.f32 0.0, %v396
  %v398 = vpop.f32.mrf.mxu0
  %399 = vdwg.mxu0
  %v400 = vpack.c.bf16 %v397, %v394
  %v401 = vld [vmem:[%s6] sm:$0x1]
  %v403 = vpack.i.b16 %v401, %v401
  %v405 = vlaneseq
  %v406 = vshrl.u32 %v405, 7
  %v407 = vsub.s32 0, %v406
  %v408 = vrot.slane %v403, %v407
  %v409 = vadd.bf16 %v400, %v408
  %v410 = vtanh.bf16.pop %v409
  %v411 = vld [vmem:[%s7] sm:$0xf]
  %v412 = vld [vmem:[%s7 + $0x4] sm:$0xf]
  %v413 = vld [vmem:[%s7 + $0x8] sm:$0xf]
  %v414 = vld [vmem:[%s7 + $0xc] sm:$0xf]
  %v419 = vunpack.c.l.b16 %v411
  %v420 = vunpack.c.l.b16 %v412
  %v421 = vunpack.c.l.b16 %v413
  %v422 = vunpack.c.l.b16 %v414
  %v423 = vpack.c.b16 %v420, %v419
  %v424 = vpack.c.b16 %v422, %v421
  %vm427 = vcmask 261120
  %v429 = vsel %vm427, %v410, 0
  %431 = vmatprep.subr.bf16.mxu0 0
  %432 = vmatpush1.bf16.msra.mxu0 0
  %433 = vmatprep.subr.bf16.mxu0 0
  %434 = vmatpush1.bf16.msra.mxu0 0
  %435 = vmatprep.subr.bf16.mxu0 0
  %436 = vmatpush1.bf16.msra.mxu0 0
  %437 = vmatprep.subr.bf16.mxu0 0
  %438 = vmatpush1.bf16.msra.mxu0 0
  %439 = vmatprep.subr.bf16.mxu0 0
  %440 = vmatpush1.bf16.msra.mxu0 0
  %441 = vmatprep.subr.bf16.mxu0 0
  %442 = vmatpush1.bf16.msra.mxu0 0
  %443 = vmatprep.subr.bf16.mxu0 0
  %444 = vmatpush1.bf16.msra.mxu0 %v424
  %445 = vmatprep.subr.bf16.mxu0 0
  %446 = vmatpush1.bf16.msra.mxu0 %v423
  %447 = vmatprep.subr.bf16.mxu0 0
  %448 = vmatpush2.bf16.msra.mxu0 0
  %449 = vmatprep.subr.bf16.mxu0 0
  %450 = vmatpush2.bf16.msra.mxu0 0
  %451 = vmatprep.subr.bf16.mxu0 0
  %452 = vmatpush2.bf16.msra.mxu0 0
  %453 = vmatprep.subr.bf16.mxu0 0
  %454 = vmatpush2.bf16.msra.mxu0 0
  %455 = vmatprep.subr.bf16.mxu0 0
  %456 = vmatpush2.bf16.msra.mxu0 0
  %457 = vmatprep.subr.bf16.mxu0 0
  %458 = vmatpush2.bf16.msra.mxu0 0
  %459 = vmatprep.subr.bf16.mxu0 0
  %460 = vmatpush2.bf16.msra.mxu0 0
  %461 = vmatprep.subr.bf16.mxu0 0
  %462 = vmatpush2.bf16.msra.mxu0 0
  %463 = vmatprep.mubr.bf16.mxu0 0
  %464 = vmatmul.mubr.bf16.gmra.mxu0 %v429
  %v465 = vpop.f32.mrf.mxu0
  %v466 = vadd.f32 0.0, %v465
  %v467 = vpop.f32.mrf.mxu0
  %v468 = vpop.f32.mrf.mxu0
  %v469 = vadd.f32 0.0, %v468
  %v470 = vpop.f32.mrf.mxu0
  %471 = vdwg.mxu0
  %v472 = vpack.c.bf16 %v469, %v466
  %v473 = vld [vmem:[%s8] sm:$0x1]
  %v475 = vpack.i.b16 %v473, %v473
  %v477 = vlaneseq
  %v478 = vshrl.u32 %v477, 7
  %v479 = vsub.s32 0, %v478
  %v480 = vrot.slane %v475, %v479
  %v481 = vadd.bf16 %v472, %v480
  %v482 = vtanh.bf16.pop %v481
  %v483 = vunpack.c.l.bf16 %v482
  %v484 = vunpack.c.h.bf16 %v482
  %v485 = vld [vmem:[%s9] sm:$0x1]
  %v486 = vunpack.c.l.bf16 %v485
  %v487 = vlaneseq
  %v488 = vshrl.u32 %v487, 7
  %v489 = vsub.s32 0, %v488
  %v490 = vrot.slane %v486, %v489
  %v491 = vmul.f32 %v483, %v490
  %v492 = vmul.f32 %v484, %v490
  %vm493 = vcmask 130048
  %v494 = vsel %vm493, %v491, 0.0
  %495 = vadd.xlane.f32.xlu0 %v494
  %v496 = vpop.xlane.xlu0 %495
  %v497 = vsel %vm493, %v492, 0.0
  %498 = vadd.xlane.f32.xlu0 %v497
  %v499 = vpop.xlane.xlu0 %498
  %v500 = vld [vmem:[#allocation2] sm:$0x1]
  %v502 = vlaneseq
  %v503 = vshrl.u32 %v502, 7
  %v504 = vsub.s32 0, %v503
  %v505 = vrot.slane %v500, %v504
  %v507 = vadd.f32 %v496, %v505
  %v508 = vadd.f32 %v499, %v505
  %v509 = vtanh.pop %v507
  %v510 = vtanh.pop %v508
  %v511 = vmul.f32 %v509, 0.5
  %v512 = vmul.f32 %v510, 0.5
  %v513 = vadd.f32 %v511, 0.5
  %v514 = vadd.f32 %v512, 0.5
  %vm515 = vcmask 7168
  %516 = vst.msk [vmem:[%s11] sm:$0xff] %vm515, %v513
  %517 = vst.msk [vmem:[%s11 + $0x8] sm:$0xff] %vm515, %v514
  // Predicated region
  $region46: #{tpu_custom_call.1} parent=0 // pred_check
    _
  $region47: #{tpu_custom_call.1} parent=0 // pred_check_branch
    %519 = sbr.rel (0) target = $region49
  $region48: #{tpu_custom_call.1} parent=0 // pred_region
    _
  $region49: #{tpu_custom_call.1} parent=0 // pred_fallthru
    _
  // Predicated region
  $region50: #{tpu_custom_call.1} parent=0 // pred_check
    _
  $region51: #{tpu_custom_call.1} parent=0 // pred_check_branch
    %521 = sbr.rel (0) target = $region53
  $region52: #{tpu_custom_call.1} parent=0 // pred_region
    _
  $region53: #{tpu_custom_call.1} parent=0 // pred_fallthru
    _

</llo_original>
